<compile_context>
chip_gen: v5e
topology: v5e:2x2
jax: 0.10.0
libtpu: 0.0.40
codegen_flags: <defaults>
</compile_context>

<pallas_src>
import jax
import jax.numpy as jnp
from jax.experimental import pallas as pl
from jax.experimental.pallas import tpu as pltpu

# ---------------- model hyper-params (small, synthetic) ----------------
B = 2          # batch
S = 10         # sequence length incl. BOS/EOS -> bb_feat seq = S - 2 = 8
H = 32         # hidden dim of the "ESM" backbone (self.hdim)
VOCAB = 33     # ESM-1b alphabet size
N_AA = 20      # len(one_letters) -> rows gathered from lm_head.weight
LN_EPS = 1e-5  # torch.nn.LayerNorm default

PACK = 128 // H        # logical rows packed per physical 128-lane row (=4)
LANES = PACK * H       # 128
SUBLANES = 8           # pad packed-row count to a multiple of this


# ---------------- Pallas kernel ----------------
def _seg_layernorm(x, seg_avg, gamma, beta):
    """LayerNorm over each 32-lane segment of packed 128-lane rows.

    seg_avg is the block-diagonal (128,128) averaging matrix kron(I4, 1/H), so
    the per-segment mean/variance reductions run on the MXU (otherwise idle for
    this path) and every lane stays dense -- no cross-lane XLU reductions.
    """
    mean = jnp.dot(x, seg_avg, preferred_element_type=jnp.float32)
    xc = x - mean
    var = jnp.dot(xc * xc, seg_avg, preferred_element_type=jnp.float32)
    return xc * jax.lax.rsqrt(var + LN_EPS) * gamma + beta


def fused_kernel(x_ref, aa_ref, seg_ref,
                 g_ref, b_ref, w1_ref, b1_ref, w2_ref, b2_ref,
                 gh_ref, bh_ref,
                 y_ref, aa_out_ref):
    """Fused: [LN -> Linear -> ReLU -> Linear] on packed backbone rows, plus the
    ln_head LayerNorm on the packed amino-acid embeddings as a second output."""
    seg = seg_ref[...]

    # ---- bb_adapter(ln(x)) path ----
    x = x_ref[...].astype(jnp.float32)
    xn = _seg_layernorm(x, seg, g_ref[...], b_ref[...])
    h = jnp.dot(xn, w1_ref[...], preferred_element_type=jnp.float32) + b1_ref[...]
    h = jnp.maximum(h, 0.0)
    y = jnp.dot(h, w2_ref[...], preferred_element_type=jnp.float32) + b2_ref[...]
    y_ref[...] = y.astype(y_ref.dtype)

    # ---- ln_head(aa_embed[esm_to_our_aatype]) path (fused 2nd output) ----
    aa = aa_ref[...].astype(jnp.float32)
    aa_out_ref[...] = _seg_layernorm(aa, seg, gh_ref[...], bh_ref[...]).astype(
        aa_out_ref.dtype)


def _vmem_spec():
    return pl.BlockSpec(memory_space=pltpu.MemorySpace.VMEM)


def fused_forward_pallas(x_packed, aa_packed, seg_avg,
                         g_t, b_t, w1_bd, b1_t, w2_bd, b2_t, gh_t, bh_t):
    m = x_packed.shape[0]
    ma = aa_packed.shape[0]
    # Everything (a few KiB of activations + 3 x 128x128 f32 weights) fits in a
    # single VMEM-resident block, so no grid is needed -- the whole forward is
    # one kernel invocation.
    # TODO(synk): at real ESM dims (H=1280, long S) add a grid over the row axis
    # with (tile_m, H) blocks, VMEM-resident bf16 weights, scalar-prefetch token
    # gather, dimension_semantics=("parallel",), and per-chip vmem_limit_bytes.
    return pl.pallas_call(
        fused_kernel,
        out_shape=(jax.ShapeDtypeStruct((m, LANES), jnp.float32),
                   jax.ShapeDtypeStruct((ma, LANES), jnp.float32)),
        in_specs=[_vmem_spec() for _ in range(11)],
        out_specs=(_vmem_spec(), _vmem_spec()),
    )(x_packed, aa_packed, seg_avg, g_t, b_t, w1_bd, b1_t, w2_bd, b2_t, gh_t, bh_t)


# ---------------- row packing glue (plain JAX) ----------------
def _pack_rows(x2d):
    """(m, H) -> (ceil_to_sublanes(m/PACK), 128) lane- and sublane-dense slab."""
    m = x2d.shape[0]
    rows = -(-m // PACK)                       # packed rows needed
    rows = -(-rows // SUBLANES) * SUBLANES     # round up to whole vregs
    pad = rows * PACK - m
    if pad:
        x2d = jnp.concatenate([x2d, jnp.zeros((pad, H), x2d.dtype)], axis=0)
    return x2d.reshape(rows, LANES), m


def _unpack_rows(xp, m):
    return xp.reshape(-1, H)[:m]


# ---------------- parameter init (deterministic, in-script) ----------------
def init_params(key):
    ks = jax.random.split(key, 8)
    p = {}
    # Stand-in for the frozen ESM-1b backbone's final-layer representation:
    # a deterministic token-embedding table.
    # TODO(synk): the real 33-layer pretrained ESM-1b transformer is a checkpoint
    # and is not reproduced here.
    p["embed_tokens"] = jax.random.normal(ks[0], (VOCAB, H), jnp.float32) * 0.02
    # self.ln
    p["ln_gamma"] = jnp.ones((H,), jnp.float32)
    p["ln_beta"] = jnp.zeros((H,), jnp.float32)
    # self.bb_adapter = FFNLayer(H, H); PyTorch stores W as (out, in)
    lim = 1.0 / jnp.sqrt(H)
    p["w1"] = jax.random.uniform(ks[1], (H, H), jnp.float32, -lim, lim)
    p["b1"] = jax.random.uniform(ks[2], (H,), jnp.float32, -lim, lim)
    p["w2"] = jax.random.uniform(ks[3], (H, H), jnp.float32, -lim, lim)
    p["b2"] = jax.random.uniform(ks[4], (H,), jnp.float32, -lim, lim)
    # self.aa_embed = backbone.lm_head.weight  (VOCAB, H)
    p["aa_embed"] = jax.random.normal(ks[5], (VOCAB, H), jnp.float32) * 0.02
    # esm_to_our_aatype: 20 alphabet indices (deterministic synthetic mapping)
    p["esm_to_our_aatype"] = (jnp.arange(N_AA, dtype=jnp.int32) + 4) % VOCAB
    # self.ln_head
    p["lnh_gamma"] = jnp.ones((H,), jnp.float32)
    p["lnh_beta"] = jnp.zeros((H,), jnp.float32)
    return p


def pack_kernel_params(p):
    """Build lane-dense kernel-side weights ONCE (pre-transposed + block-diag)."""
    eye = jnp.eye(PACK, dtype=jnp.float32)
    kp = {}
    # per-32-lane-segment averaging matrix
    kp["seg_avg"] = jnp.kron(eye, jnp.full((H, H), 1.0 / H, jnp.float32))
    # PyTorch Linear is x @ W.T: transpose once here, then block-diagonalize so
    # 4 packed segments share the same weights.
    kp["w1_bd"] = jnp.kron(eye, p["w1"].T)
    kp["w2_bd"] = jnp.kron(eye, p["w2"].T)
    kp["b1_t"] = jnp.tile(p["b1"], PACK)[None, :]
    kp["b2_t"] = jnp.tile(p["b2"], PACK)[None, :]
    kp["g_t"] = jnp.tile(p["ln_gamma"], PACK)[None, :]
    kp["b_t"] = jnp.tile(p["ln_beta"], PACK)[None, :]
    kp["gh_t"] = jnp.tile(p["lnh_gamma"], PACK)[None, :]
    kp["bh_t"] = jnp.tile(p["lnh_beta"], PACK)[None, :]
    return kp


# ---------------- forward (mirrors ESMBackbone.forward, aa_expand='backbone') ---
@jax.jit
def esm_backbone_forward(params, kparams, tokens):
    b, s = tokens.shape
    rep = params["embed_tokens"][tokens]                  # (B, S, H) backbone stub
    # Slice BOS/EOS BEFORE the kernel: adapter is per-row, so results match and
    # we skip ~2/S of the rows.
    x2d = rep[:, 1:-1].reshape(-1, H)                     # (B*(S-2), H)
    x_packed, m = _pack_rows(x2d)                         # (8, 128)

    aa_rows = params["aa_embed"][params["esm_to_our_aatype"]]   # (20, H) gather glue
    aa_packed, ma = _pack_rows(aa_rows)                   # (8, 128)

    y_packed, aa_out_packed = fused_forward_pallas(
        x_packed, aa_packed, kparams["seg_avg"],
        kparams["g_t"], kparams["b_t"],
        kparams["w1_bd"], kparams["b1_t"],
        kparams["w2_bd"], kparams["b2_t"],
        kparams["gh_t"], kparams["bh_t"])

    bb_feat = _unpack_rows(y_packed, m).reshape(b, s - 2, H)
    aa_embed = _unpack_rows(aa_out_packed, ma)
    return {"bb_feat": bb_feat, "aa_embed": aa_embed}


# ---------------- pure-JAX reference for verification ----------------
def _ln_ref(x, g, b):
    mean = jnp.mean(x, axis=-1, keepdims=True)
    var = jnp.mean((x - mean) ** 2, axis=-1, keepdims=True)
    return (x - mean) / jnp.sqrt(var + LN_EPS) * g + b


def esm_backbone_ref(params, tokens):
    rep = params["embed_tokens"][tokens]
    xn = _ln_ref(rep, params["ln_gamma"], params["ln_beta"])
    h = jnp.maximum(xn @ params["w1"].T + params["b1"], 0.0)
    y = h @ params["w2"].T + params["b2"]
    bb_feat = y[:, 1:-1]
    aa_rows = params["aa_embed"][params["esm_to_our_aatype"]]
    aa_embed = _ln_ref(aa_rows, params["lnh_gamma"], params["lnh_beta"])
    return {"bb_feat": bb_feat, "aa_embed": aa_embed}


if __name__ == "__main__":
    key = jax.random.PRNGKey(0)
    pkey, tkey = jax.random.split(key)
    params = init_params(pkey)
    kparams = pack_kernel_params(params)

    # deterministic synthetic token ids (B, S), with BOS=0 / EOS=2 as in ESM
    inner = jax.random.randint(tkey, (B, S - 2), 4, 24, dtype=jnp.int32)
    tokens = jnp.concatenate(
        [jnp.zeros((B, 1), jnp.int32), inner, jnp.full((B, 1), 2, jnp.int32)], axis=1
    )

    out = esm_backbone_forward(params, kparams, tokens)
    out = jax.tree_util.tree_map(jax.block_until_ready, out)

    ref = esm_backbone_ref(params, tokens)
    assert out["bb_feat"].shape == (B, S - 2, H)
    assert out["aa_embed"].shape == (N_AA, H)
    assert jnp.allclose(out["bb_feat"], ref["bb_feat"], atol=1e-4, rtol=1e-4)
    assert jnp.allclose(out["aa_embed"], ref["aa_embed"], atol=1e-4, rtol=1e-4)

    print("KERNEL_OK")
</pallas_src>

<mosaic_0001>
module attributes {stable_mosaic.version = 11 : i64} {
  func.func @fused_kernel(%arg0: memref<8x128xf32, #tpu.memory_space<vmem>>, %arg1: memref<8x128xf32, #tpu.memory_space<vmem>>, %arg2: memref<128x128xf32, #tpu.memory_space<vmem>>, %arg3: memref<1x128xf32, #tpu.memory_space<vmem>>, %arg4: memref<1x128xf32, #tpu.memory_space<vmem>>, %arg5: memref<128x128xf32, #tpu.memory_space<vmem>>, %arg6: memref<1x128xf32, #tpu.memory_space<vmem>>, %arg7: memref<128x128xf32, #tpu.memory_space<vmem>>, %arg8: memref<1x128xf32, #tpu.memory_space<vmem>>, %arg9: memref<1x128xf32, #tpu.memory_space<vmem>>, %arg10: memref<1x128xf32, #tpu.memory_space<vmem>>, %arg11: memref<8x128xf32, #tpu.memory_space<vmem>>, %arg12: memref<8x128xf32, #tpu.memory_space<vmem>>) attributes {dimension_semantics = [], scalar_prefetch = 0 : i64, scratch_operands = 0 : i64, tpu.core_type = #tpu.core_type<tc>} {
    %c0 = arith.constant 0 : index
    %c0_0 = arith.constant 0 : index
    %0 = vector.load %arg2[%c0, %c0_0] : memref<128x128xf32, #tpu.memory_space<vmem>>, vector<128x128xf32>
    %c0_1 = arith.constant 0 : index
    %c0_2 = arith.constant 0 : index
    %1 = vector.load %arg0[%c0_1, %c0_2] : memref<8x128xf32, #tpu.memory_space<vmem>>, vector<8x128xf32>
    %c0_3 = arith.constant 0 : index
    %c0_4 = arith.constant 0 : index
    %2 = vector.load %arg3[%c0_3, %c0_4] : memref<1x128xf32, #tpu.memory_space<vmem>>, vector<1x128xf32>
    %c0_5 = arith.constant 0 : index
    %c0_6 = arith.constant 0 : index
    %3 = vector.load %arg4[%c0_5, %c0_6] : memref<1x128xf32, #tpu.memory_space<vmem>>, vector<1x128xf32>
    %cst = arith.constant dense<0.000000e+00> : vector<8x128xf32>
    %4 = tpu.matmul %1, %0, %cst {dimension_numbers = #tpu.dot_dimension_numbers<[1], [0], [0], [1], [0, 0, 1, 1], [], []>} : vector<8x128xf32>, vector<128x128xf32>, vector<8x128xf32> -> vector<8x128xf32>
    %5 = arith.subf %1, %4 : vector<8x128xf32>
    %6 = arith.mulf %5, %5 : vector<8x128xf32>
    %cst_7 = arith.constant dense<0.000000e+00> : vector<8x128xf32>
    %7 = tpu.matmul %6, %0, %cst_7 {dimension_numbers = #tpu.dot_dimension_numbers<[1], [0], [0], [1], [0, 0, 1, 1], [], []>} : vector<8x128xf32>, vector<128x128xf32>, vector<8x128xf32> -> vector<8x128xf32>
    %cst_8 = arith.constant 9.99999974E-6 : f32
    %8 = vector.broadcast %cst_8 : f32 to vector<8x128xf32>
    %9 = arith.addf %7, %8 : vector<8x128xf32>
    %10 = math.rsqrt %9 : vector<8x128xf32>
    %11 = arith.mulf %5, %10 : vector<8x128xf32>
    %12 = vector.broadcast %2 : vector<1x128xf32> to vector<8x128xf32>
    %13 = arith.mulf %11, %12 : vector<8x128xf32>
    %14 = vector.broadcast %3 : vector<1x128xf32> to vector<8x128xf32>
    %15 = arith.addf %13, %14 : vector<8x128xf32>
    %c0_9 = arith.constant 0 : index
    %c0_10 = arith.constant 0 : index
    %16 = vector.load %arg5[%c0_9, %c0_10] : memref<128x128xf32, #tpu.memory_space<vmem>>, vector<128x128xf32>
    %cst_11 = arith.constant dense<0.000000e+00> : vector<8x128xf32>
    %17 = tpu.matmul %15, %16, %cst_11 {dimension_numbers = #tpu.dot_dimension_numbers<[1], [0], [0], [1], [0, 0, 1, 1], [], []>} : vector<8x128xf32>, vector<128x128xf32>, vector<8x128xf32> -> vector<8x128xf32>
    %c0_12 = arith.constant 0 : index
    %c0_13 = arith.constant 0 : index
    %18 = vector.load %arg6[%c0_12, %c0_13] : memref<1x128xf32, #tpu.memory_space<vmem>>, vector<1x128xf32>
    %19 = vector.broadcast %18 : vector<1x128xf32> to vector<8x128xf32>
    %20 = arith.addf %17, %19 : vector<8x128xf32>
    %cst_14 = arith.constant 0.000000e+00 : f32
    %21 = vector.broadcast %cst_14 : f32 to vector<8x128xf32>
    %22 = arith.maximumf %20, %21 : vector<8x128xf32>
    %c0_15 = arith.constant 0 : index
    %c0_16 = arith.constant 0 : index
    %23 = vector.load %arg7[%c0_15, %c0_16] : memref<128x128xf32, #tpu.memory_space<vmem>>, vector<128x128xf32>
    %cst_17 = arith.constant dense<0.000000e+00> : vector<8x128xf32>
    %24 = tpu.matmul %22, %23, %cst_17 {dimension_numbers = #tpu.dot_dimension_numbers<[1], [0], [0], [1], [0, 0, 1, 1], [], []>} : vector<8x128xf32>, vector<128x128xf32>, vector<8x128xf32> -> vector<8x128xf32>
    %c0_18 = arith.constant 0 : index
    %c0_19 = arith.constant 0 : index
    %25 = vector.load %arg8[%c0_18, %c0_19] : memref<1x128xf32, #tpu.memory_space<vmem>>, vector<1x128xf32>
    %26 = vector.broadcast %25 : vector<1x128xf32> to vector<8x128xf32>
    %27 = arith.addf %24, %26 : vector<8x128xf32>
    %c0_20 = arith.constant 0 : index
    %c0_21 = arith.constant 0 : index
    %28 = vector.load %arg11[%c0_20, %c0_21] : memref<8x128xf32, #tpu.memory_space<vmem>>, vector<8x128xf32>
    tpu.vector_store %arg11[%c0_20, %c0_21], %27 {strides = array<i32>} : memref<8x128xf32, #tpu.memory_space<vmem>>, vector<8x128xf32>,
    %c0_22 = arith.constant 0 : index
    %c0_23 = arith.constant 0 : index
    %29 = vector.load %arg1[%c0_22, %c0_23] : memref<8x128xf32, #tpu.memory_space<vmem>>, vector<8x128xf32>
    %c0_24 = arith.constant 0 : index
    %c0_25 = arith.constant 0 : index
    %30 = vector.load %arg9[%c0_24, %c0_25] : memref<1x128xf32, #tpu.memory_space<vmem>>, vector<1x128xf32>
    %c0_26 = arith.constant 0 : index
    %c0_27 = arith.constant 0 : index
    %31 = vector.load %arg10[%c0_26, %c0_27] : memref<1x128xf32, #tpu.memory_space<vmem>>, vector<1x128xf32>
    %cst_28 = arith.constant dense<0.000000e+00> : vector<8x128xf32>
    %32 = tpu.matmul %29, %0, %cst_28 {dimension_numbers = #tpu.dot_dimension_numbers<[1], [0], [0], [1], [0, 0, 1, 1], [], []>} : vector<8x128xf32>, vector<128x128xf32>, vector<8x128xf32> -> vector<8x128xf32>
    %33 = arith.subf %29, %32 : vector<8x128xf32>
    %34 = arith.mulf %33, %33 : vector<8x128xf32>
    %cst_29 = arith.constant dense<0.000000e+00> : vector<8x128xf32>
    %35 = tpu.matmul %34, %0, %cst_29 {dimension_numbers = #tpu.dot_dimension_numbers<[1], [0], [0], [1], [0, 0, 1, 1], [], []>} : vector<8x128xf32>, vector<128x128xf32>, vector<8x128xf32> -> vector<8x128xf32>
    %cst_30 = arith.constant 9.99999974E-6 : f32
    %36 = vector.broadcast %cst_30 : f32 to vector<8x128xf32>
    %37 = arith.addf %35, %36 : vector<8x128xf32>
    %38 = math.rsqrt %37 : vector<8x128xf32>
    %39 = arith.mulf %33, %38 : vector<8x128xf32>
    %40 = vector.broadcast %30 : vector<1x128xf32> to vector<8x128xf32>
    %41 = arith.mulf %39, %40 : vector<8x128xf32>
    %42 = vector.broadcast %31 : vector<1x128xf32> to vector<8x128xf32>
    %43 = arith.addf %41, %42 : vector<8x128xf32>
    %c0_31 = arith.constant 0 : index
    %c0_32 = arith.constant 0 : index
    %44 = vector.load %arg12[%c0_31, %c0_32] : memref<8x128xf32, #tpu.memory_space<vmem>>, vector<8x128xf32>
    tpu.vector_store %arg12[%c0_31, %c0_32], %43 {strides = array<i32>} : memref<8x128xf32, #tpu.memory_space<vmem>>, vector<8x128xf32>,
    return
  }
}

</mosaic_0001>

<llo_original>
// kernel: esm_backbone_forward.1
$region0: #{esm_backbone_forward.1}
  #allocation0 [shape = 'u32[]', space=smem, size = 0x4, offset = 0x4, fixed_abs, tag = 'smem constant byte address 0x4 - core index']
  #allocation1 [shape = 'u32[72,128]{1,0:T(1,128)}', space=vmem, size = 0x9000, scoped, tag = 'internal scratch']
  %s0 = inlined_call_operand.vmem [shape: f32[8,128], index: 0, kind: input, shape index: {}]
  %s1 = inlined_call_operand.vmem [shape: f32[8,128], index: 1, kind: input, shape index: {}]
  %s2 = inlined_call_operand.vmem [shape: f32[128,128], index: 2, kind: input, shape index: {}]
  %s3 = inlined_call_operand.vmem [shape: f32[1,128], index: 3, kind: input, shape index: {}]
  %s4 = inlined_call_operand.vmem [shape: f32[1,128], index: 4, kind: input, shape index: {}]
  %s5 = inlined_call_operand.vmem [shape: f32[128,128], index: 5, kind: input, shape index: {}]
  %s6 = inlined_call_operand.vmem [shape: f32[1,128], index: 6, kind: input, shape index: {}]
  %s7 = inlined_call_operand.vmem [shape: f32[128,128], index: 7, kind: input, shape index: {}]
  %s8 = inlined_call_operand.vmem [shape: f32[1,128], index: 8, kind: input, shape index: {}]
  %s9 = inlined_call_operand.vmem [shape: f32[1,128], index: 9, kind: input, shape index: {}]
  %s10 = inlined_call_operand.vmem [shape: f32[1,128], index: 10, kind: input, shape index: {}]
  %s11 = inlined_call_operand.vmem [shape: f32[8,128], index: 11, kind: output, shape index: {0}]
  %s12 = inlined_call_operand.vmem [shape: f32[8,128], index: 12, kind: output, shape index: {1}]
  %13 = xla_tuple %s11, %s12
  %s14 = sld [smem:[#allocation0]]
  $region62: #{esm_backbone_forward.1} parent=0
    _
  %s16 = ssub.s32 1, %s14
  %s17 = scalar_select 0, %s16, %s14
  // Predicated region
  $region2: #{esm_backbone_forward.1} parent=0 // pred_check
    _
  $region3: #{esm_backbone_forward.1} parent=0 // pred_check_branch
    %19 = sbr.rel (0) target = $region5
  $region4: #{esm_backbone_forward.1} parent=0 // pred_region
    _
  $region5: #{esm_backbone_forward.1} parent=0 // pred_fallthru
    _
  // Predicated region
  $region6: #{esm_backbone_forward.1} parent=0 // pred_check
    _
  $region7: #{esm_backbone_forward.1} parent=0 // pred_check_branch
    %21 = sbr.rel (0) target = $region9
  $region8: #{esm_backbone_forward.1} parent=0 // pred_region
    _
  $region9: #{esm_backbone_forward.1} parent=0 // pred_fallthru
    _
  // Predicated region
  $region10: #{esm_backbone_forward.1} parent=0 // pred_check
    _
  $region11: #{esm_backbone_forward.1} parent=0 // pred_check_branch
    %23 = sbr.rel (0) target = $region13
  $region12: #{esm_backbone_forward.1} parent=0 // pred_region
    _
  $region13: #{esm_backbone_forward.1} parent=0 // pred_fallthru
    _
  // Predicated region
  $region14: #{esm_backbone_forward.1} parent=0 // pred_check
    _
  $region15: #{esm_backbone_forward.1} parent=0 // pred_check_branch
    %25 = sbr.rel (0) target = $region17
  $region16: #{esm_backbone_forward.1} parent=0 // pred_region
    _
  $region17: #{esm_backbone_forward.1} parent=0 // pred_fallthru
    _
  // Predicated region
  $region18: #{esm_backbone_forward.1} parent=0 // pred_check
    _
  $region19: #{esm_backbone_forward.1} parent=0 // pred_check_branch
    %27 = sbr.rel (0) target = $region21
  $region20: #{esm_backbone_forward.1} parent=0 // pred_region
    _
  $region21: #{esm_backbone_forward.1} parent=0 // pred_fallthru
    _
  // Predicated region
  $region22: #{esm_backbone_forward.1} parent=0 // pred_check
    _
  $region23: #{esm_backbone_forward.1} parent=0 // pred_check_branch
    %29 = sbr.rel (0) target = $region25
  $region24: #{esm_backbone_forward.1} parent=0 // pred_region
    _
  $region25: #{esm_backbone_forward.1} parent=0 // pred_fallthru
    _
  // Predicated region
  $region26: #{esm_backbone_forward.1} parent=0 // pred_check
    _
  $region27: #{esm_backbone_forward.1} parent=0 // pred_check_branch
    %31 = sbr.rel (0) target = $region29
  $region28: #{esm_backbone_forward.1} parent=0 // pred_region
    _
  $region29: #{esm_backbone_forward.1} parent=0 // pred_fallthru
    _
  // Predicated region
  $region30: #{esm_backbone_forward.1} parent=0 // pred_check
    _
  $region31: #{esm_backbone_forward.1} parent=0 // pred_check_branch
    %33 = sbr.rel (0) target = $region33
  $region32: #{esm_backbone_forward.1} parent=0 // pred_region
    _
  $region33: #{esm_backbone_forward.1} parent=0 // pred_fallthru
    _
  // Predicated region
  $region34: #{esm_backbone_forward.1} parent=0 // pred_check
    _
  $region35: #{esm_backbone_forward.1} parent=0 // pred_check_branch
    %35 = sbr.rel (0) target = $region37
  $region36: #{esm_backbone_forward.1} parent=0 // pred_region
    _
  $region37: #{esm_backbone_forward.1} parent=0 // pred_fallthru
    _
  // Predicated region
  $region38: #{esm_backbone_forward.1} parent=0 // pred_check
    _
  $region39: #{esm_backbone_forward.1} parent=0 // pred_check_branch
    %37 = sbr.rel (0) target = $region41
  $region40: #{esm_backbone_forward.1} parent=0 // pred_region
    _
  $region41: #{esm_backbone_forward.1} parent=0 // pred_fallthru
    _
  // Predicated region
  $region42: #{esm_backbone_forward.1} parent=0 // pred_check
    _
  $region43: #{esm_backbone_forward.1} parent=0 // pred_check_branch
    %39 = sbr.rel (0) target = $region45
  $region44: #{esm_backbone_forward.1} parent=0 // pred_region
    _
  $region45: #{esm_backbone_forward.1} parent=0 // pred_fallthru
    _
  %v40 = vld [vmem:[%s2] sm:$0xff]
  %v41 = vld [vmem:[%s2 + $0x8] sm:$0xff]
  %v42 = vld [vmem:[%s2 + $0x10] sm:$0xff]
  %v43 = vld [vmem:[%s2 + $0x18] sm:$0xff]
  %v44 = vld [vmem:[%s2 + $0x20] sm:$0xff]
  %v45 = vld [vmem:[%s2 + $0x28] sm:$0xff]
  %v46 = vld [vmem:[%s2 + $0x30] sm:$0xff]
  %v47 = vld [vmem:[%s2 + $0x38] sm:$0xff]
  %v48 = vld [vmem:[%s2 + $0x40] sm:$0xff]
  %v49 = vld [vmem:[%s2 + $0x48] sm:$0xff]
  %v50 = vld [vmem:[%s2 + $0x50] sm:$0xff]
  %v51 = vld [vmem:[%s2 + $0x58] sm:$0xff]
  %v52 = vld [vmem:[%s2 + $0x60] sm:$0xff]
  %v53 = vld [vmem:[%s2 + $0x68] sm:$0xff]
  %v54 = vld [vmem:[%s2 + $0x70] sm:$0xff]
  %v55 = vld [vmem:[%s2 + $0x78] sm:$0xff]
  %v56 = vld [vmem:[%s0] sm:$0xff]
  %v57 = vld [vmem:[%s3] sm:$0x1]
  %v58 = vld [vmem:[%s4] sm:$0x1]
  %59 = vmatpush.msra.mxu0 %v55
  %60 = vmatpush.msra.mxu0 %v54
  %61 = vmatpush.msra.mxu0 %v53
  %62 = vmatpush.msra.mxu0 %v52
  %63 = vmatpush.msra.mxu0 %v51
  %64 = vmatpush.msra.mxu0 %v50
  %65 = vmatpush.msra.mxu0 %v49
  %66 = vmatpush.msra.mxu0 %v48
  %67 = vmatpush.msra.mxu0 %v47
  %68 = vmatpush.msra.mxu0 %v46
  %69 = vmatpush.msra.mxu0 %v45
  %70 = vmatpush.msra.mxu0 %v44
  %71 = vmatpush.msra.mxu0 %v43
  %72 = vmatpush.msra.mxu0 %v42
  %73 = vmatpush.msra.mxu0 %v41
  %74 = vmatpush.msra.mxu0 %v40
  %75 = vmatmul.f32.gmra.mxu0 %v56
  %v76 = vpop.f32.mrf.mxu0
  %v77 = vadd.f32 0.0, %v76
  %78 = vdwg.mxu0
  %v79 = vsub.f32 %v56, %v77
  %v80 = vmul.f32 %v79, %v79
  %81 = vmatpush.msra.mxu0 %v55
  %82 = vmatpush.msra.mxu0 %v54
  %83 = vmatpush.msra.mxu0 %v53
  %84 = vmatpush.msra.mxu0 %v52
  %85 = vmatpush.msra.mxu0 %v51
  %86 = vmatpush.msra.mxu0 %v50
  %87 = vmatpush.msra.mxu0 %v49
  %88 = vmatpush.msra.mxu0 %v48
  %89 = vmatpush.msra.mxu0 %v47
  %90 = vmatpush.msra.mxu0 %v46
  %91 = vmatpush.msra.mxu0 %v45
  %92 = vmatpush.msra.mxu0 %v44
  %93 = vmatpush.msra.mxu0 %v43
  %94 = vmatpush.msra.mxu0 %v42
  %95 = vmatpush.msra.mxu0 %v41
  %96 = vmatpush.msra.mxu0 %v40
  %97 = vmatmul.f32.gmra.mxu0 %v80
  %v98 = vpop.f32.mrf.mxu0
  %v99 = vadd.f32 1e-05, %v98
  %100 = vdwg.mxu0
  %v101 = vrsqrt.pop %v99
  %v102 = vmul.f32 %v101, %v99
  %v103 = vmul.f32 %v102, %v101
  %v104 = vmul.f32 0.5, %v103
  %v105 = vsub.f32 1.5, %v104
  %v106 = vmul.f32 %v101, %v105
  %vm107 = vweird.f32 %v99
  %vm108 = vweird.f32 %v101
  %vm109 = vmor %vm107, %vm108
  %v110 = vsel %vm109, %v101, %v106
  %v111 = vmul.f32 %v79, %v110
  %v113 = vperm.slane %v57, 0
  %v115 = vmul.f32 %v111, %v113
  %v117 = vperm.slane %v58, 0
  %v119 = vadd.f32 %v115, %v117
  %v120 = vld [vmem:[%s5] sm:$0xff]
  %v121 = vld [vmem:[%s5 + $0x8] sm:$0xff]
  %v122 = vld [vmem:[%s5 + $0x10] sm:$0xff]
  %v123 = vld [vmem:[%s5 + $0x18] sm:$0xff]
  %v124 = vld [vmem:[%s5 + $0x20] sm:$0xff]
  %v125 = vld [vmem:[%s5 + $0x28] sm:$0xff]
  %v126 = vld [vmem:[%s5 + $0x30] sm:$0xff]
  %v127 = vld [vmem:[%s5 + $0x38] sm:$0xff]
  %v128 = vld [vmem:[%s5 + $0x40] sm:$0xff]
  %v129 = vld [vmem:[%s5 + $0x48] sm:$0xff]
  %v130 = vld [vmem:[%s5 + $0x50] sm:$0xff]
  %v131 = vld [vmem:[%s5 + $0x58] sm:$0xff]
  %v132 = vld [vmem:[%s5 + $0x60] sm:$0xff]
  %v133 = vld [vmem:[%s5 + $0x68] sm:$0xff]
  %v134 = vld [vmem:[%s5 + $0x70] sm:$0xff]
  %v135 = vld [vmem:[%s5 + $0x78] sm:$0xff]
  %v136 = vld [vmem:[%s6] sm:$0x1]
  %v138 = vperm.slane %v136, 0
  %140 = vmatpush.msra.mxu0 %v135
  %141 = vmatpush.msra.mxu0 %v134
  %142 = vmatpush.msra.mxu0 %v133
  %143 = vmatpush.msra.mxu0 %v132
  %144 = vmatpush.msra.mxu0 %v131
  %145 = vmatpush.msra.mxu0 %v130
  %146 = vmatpush.msra.mxu0 %v129
  %147 = vmatpush.msra.mxu0 %v128
  %148 = vmatpush.msra.mxu0 %v127
  %149 = vmatpush.msra.mxu0 %v126
  %150 = vmatpush.msra.mxu0 %v125
  %151 = vmatpush.msra.mxu0 %v124
  %152 = vmatpush.msra.mxu0 %v123
  %153 = vmatpush.msra.mxu0 %v122
  %154 = vmatpush.msra.mxu0 %v121
  %155 = vmatpush.msra.mxu0 %v120
  %156 = vmatmul.f32.gmra.mxu0 %v119
  %v157 = vpop.f32.mrf.mxu0
  %v158 = vadd.f32 %v138, %v157
  %159 = vdwg.mxu0
  %v160 = vmax.f32 %v158, 0.0
  %v161 = vld [vmem:[%s7] sm:$0xff]
  %v162 = vld [vmem:[%s7 + $0x8] sm:$0xff]
  %v163 = vld [vmem:[%s7 + $0x10] sm:$0xff]
  %v164 = vld [vmem:[%s7 + $0x18] sm:$0xff]
  %v165 = vld [vmem:[%s7 + $0x20] sm:$0xff]
  %v166 = vld [vmem:[%s7 + $0x28] sm:$0xff]
  %v167 = vld [vmem:[%s7 + $0x30] sm:$0xff]
  %v168 = vld [vmem:[%s7 + $0x38] sm:$0xff]
  %v169 = vld [vmem:[%s7 + $0x40] sm:$0xff]
  %v170 = vld [vmem:[%s7 + $0x48] sm:$0xff]
  %v171 = vld [vmem:[%s7 + $0x50] sm:$0xff]
  %v172 = vld [vmem:[%s7 + $0x58] sm:$0xff]
  %v173 = vld [vmem:[%s7 + $0x60] sm:$0xff]
  %v174 = vld [vmem:[%s7 + $0x68] sm:$0xff]
  %v175 = vld [vmem:[%s7 + $0x70] sm:$0xff]
  %v176 = vld [vmem:[%s7 + $0x78] sm:$0xff]
  %v177 = vld [vmem:[%s8] sm:$0x1]
  %v179 = vperm.slane %v177, 0
  %181 = vmatpush.msra.mxu0 %v176
  %182 = vmatpush.msra.mxu0 %v175
  %183 = vmatpush.msra.mxu0 %v174
  %184 = vmatpush.msra.mxu0 %v173
  %185 = vmatpush.msra.mxu0 %v172
  %186 = vmatpush.msra.mxu0 %v171
  %187 = vmatpush.msra.mxu0 %v170
  %188 = vmatpush.msra.mxu0 %v169
  %189 = vmatpush.msra.mxu0 %v168
  %190 = vmatpush.msra.mxu0 %v167
  %191 = vmatpush.msra.mxu0 %v166
  %192 = vmatpush.msra.mxu0 %v165
  %193 = vmatpush.msra.mxu0 %v164
  %194 = vmatpush.msra.mxu0 %v163
  %195 = vmatpush.msra.mxu0 %v162
  %196 = vmatpush.msra.mxu0 %v161
  %197 = vmatmul.f32.gmra.mxu0 %v160
  %v198 = vpop.f32.mrf.mxu0
  %v199 = vadd.f32 %v179, %v198
  %200 = vdwg.mxu0
  %201 = vst [vmem:[%s11] sm:$0xff] %v199
  %v202 = vld [vmem:[%s1] sm:$0xff]
  %v203 = vld [vmem:[%s9] sm:$0x1]
  %v204 = vld [vmem:[%s10] sm:$0x1]
  %205 = vmatpush.msra.mxu0 %v55
  %206 = vmatpush.msra.mxu0 %v54
  %207 = vmatpush.msra.mxu0 %v53
  %208 = vmatpush.msra.mxu0 %v52
  %209 = vmatpush.msra.mxu0 %v51
  %210 = vmatpush.msra.mxu0 %v50
  %211 = vmatpush.msra.mxu0 %v49
  %212 = vmatpush.msra.mxu0 %v48
  %213 = vmatpush.msra.mxu0 %v47
  %214 = vmatpush.msra.mxu0 %v46
  %215 = vmatpush.msra.mxu0 %v45
  %216 = vmatpush.msra.mxu0 %v44
  %217 = vmatpush.msra.mxu0 %v43
  %218 = vmatpush.msra.mxu0 %v42
  %219 = vmatpush.msra.mxu0 %v41
  %220 = vmatpush.msra.mxu0 %v40
  %221 = vmatmul.f32.gmra.mxu0 %v202
  %v222 = vpop.f32.mrf.mxu0
  %v223 = vadd.f32 0.0, %v222
  %224 = vdwg.mxu0
  %v225 = vsub.f32 %v202, %v223
  %v226 = vmul.f32 %v225, %v225
  %227 = vmatpush.msra.mxu0 %v55
  %228 = vmatpush.msra.mxu0 %v54
  %229 = vmatpush.msra.mxu0 %v53
  %230 = vmatpush.msra.mxu0 %v52
  %231 = vmatpush.msra.mxu0 %v51
  %232 = vmatpush.msra.mxu0 %v50
  %233 = vmatpush.msra.mxu0 %v49
  %234 = vmatpush.msra.mxu0 %v48
  %235 = vmatpush.msra.mxu0 %v47
  %236 = vmatpush.msra.mxu0 %v46
  %237 = vmatpush.msra.mxu0 %v45
  %238 = vmatpush.msra.mxu0 %v44
  %239 = vmatpush.msra.mxu0 %v43
  %240 = vmatpush.msra.mxu0 %v42
  %241 = vmatpush.msra.mxu0 %v41
  %242 = vmatpush.msra.mxu0 %v40
  %243 = vmatmul.f32.gmra.mxu0 %v226
  %v244 = vpop.f32.mrf.mxu0
  %v245 = vadd.f32 1e-05, %v244
  %246 = vdwg.mxu0
  %v247 = vrsqrt.pop %v245
  %v248 = vmul.f32 %v247, %v245
  %v249 = vmul.f32 %v248, %v247
  %v250 = vmul.f32 0.5, %v249
  %v251 = vsub.f32 1.5, %v250
  %v252 = vmul.f32 %v247, %v251
  %vm253 = vweird.f32 %v245
  %vm254 = vweird.f32 %v247
  %vm255 = vmor %vm253, %vm254
  %v256 = vsel %vm255, %v247, %v252
  %v257 = vmul.f32 %v225, %v256
  %v259 = vperm.slane %v203, 0
  %v261 = vmul.f32 %v257, %v259
  %v263 = vperm.slane %v204, 0
  %v265 = vadd.f32 %v261, %v263
  %266 = vst [vmem:[%s12] sm:$0xff] %v265
  // Predicated region
  $region46: #{esm_backbone_forward.1} parent=0 // pred_check
    _
  $region47: #{esm_backbone_forward.1} parent=0 // pred_check_branch
    %268 = sbr.rel (0) target = $region49
  $region48: #{esm_backbone_forward.1} parent=0 // pred_region
    _
  $region49: #{esm_backbone_forward.1} parent=0 // pred_fallthru
    _
  // Predicated region
  $region50: #{esm_backbone_forward.1} parent=0 // pred_check
    _
  $region51: #{esm_backbone_forward.1} parent=0 // pred_check_branch
    %270 = sbr.rel (0) target = $region53
  $region52: #{esm_backbone_forward.1} parent=0 // pred_region
    _
  $region53: #{esm_backbone_forward.1} parent=0 // pred_fallthru
    _
  // Predicated region
  $region54: #{esm_backbone_forward.1} parent=0 // pred_check
    _
  $region55: #{esm_backbone_forward.1} parent=0 // pred_check_branch
    %272 = sbr.rel (0) target = $region57
  $region56: #{esm_backbone_forward.1} parent=0 // pred_region
    _
  $region57: #{esm_backbone_forward.1} parent=0 // pred_fallthru
    _
  // Predicated region
  $region58: #{esm_backbone_forward.1} parent=0 // pred_check
    _
  $region59: #{esm_backbone_forward.1} parent=0 // pred_check_branch
    %274 = sbr.rel (0) target = $region61
  $region60: #{esm_backbone_forward.1} parent=0 // pred_region
    _
  $region61: #{esm_backbone_forward.1} parent=0 // pred_fallthru
    _

</llo_original>
